<compile_context>
chip_gen: v6e
topology: v6e:2x2x1
jax: 0.10.0
libtpu: 0.0.40
codegen_flags: <defaults>
</compile_context>

<pallas_src>
import jax
import jax.numpy as jnp
from jax import lax
from jax.experimental import pallas as pl
from jax.experimental.pallas import tpu as pltpu


def _vmem_budget():
    """Returns (physical VMEM bytes, scoped vmem_limit_bytes to request)."""
    cap = 64 << 20  # conservative default = v7x per-TensorCore VMEM
    try:
        info = pltpu.get_tpu_info()
        cap = int(getattr(info, "vmem_capacity_bytes", cap)) or cap
    except Exception:
        pass
    # Leave headroom for Mosaic internal scratch. 96 MiB on v5e/v6e
    # (128 MiB physical), 48 MiB on v7x (64 MiB physical).
    limit = int(min((cap * 3) // 4, 96 << 20))
    return cap, limit


def _sublane(itemsize):
    return 8 if itemsize >= 4 else 8 * (4 // itemsize)  # 8 rows f32, 16 rows bf16


def _pick_row_block(NC, S, itemsize, sub, block_bytes):
    """Largest sublane-aligned row block under `block_bytes` that still gives
    >=2 (ideally >=4, while blocks stay >=1 MiB) grid steps for megacore."""
    if NC <= sub:
        return NC
    rows_fit = max(1, block_bytes // max(1, S * itemsize))
    R = min(NC, rows_fit)
    R = max(sub, (R // sub) * sub)

    def n_blocks(r):
        return -(-NC // r)

    while R > sub:
        too_few = n_blocks(R) < 2
        want_more = n_blocks(R) < 4 and (R // 2) * S * itemsize >= (1 << 20)
        if not (too_few or want_more):
            break
        new_r = max(sub, ((R // 2) // sub) * sub)
        if new_r == R:
            break
        R = new_r
    return R


def _store_affine(o_ref, x_ref, scale_f32, bias_f32, low_prec):
    """out = x * scale + bias.  For bf16 the apply runs in bf16 (reduction is
    always f32); output precision is bf16 anyway, and it halves vreg traffic."""
    if low_prec:
        dt = o_ref.dtype
        o_ref[...] = x_ref[...] * scale_f32.astype(dt) + bias_f32.astype(dt)
    else:
        o_ref[...] = (x_ref[...].astype(jnp.float32) * scale_f32
                      + bias_f32).astype(o_ref.dtype)


# --------------------------- single-pass path ------------------------------


def _grn_single_pass(x2d, g_rows, b_rows, R, vmem_limit):
    NC, S = x2d.shape
    out_dtype = x2d.dtype
    itemsize = jnp.dtype(out_dtype).itemsize
    low_prec = jnp.dtype(out_dtype) == jnp.dtype(jnp.bfloat16)

    def kernel(x_ref, g_ref, b_ref, o_ref):
        # Reduce in f32. The block last dim equals S (full array dim), so when
        # S % 128 != 0 Mosaic masks the padded lanes of the reduce; rows of a
        # partial last row block compute garbage but are never stored.
        x32 = x_ref[...].astype(jnp.float32)
        ssq = jnp.sum(x32 * x32, axis=-1, keepdims=True)      # (R, 1)
        gx = jnp.sqrt(ssq)
        nx = gx / (gx + 1e-6)            # mean over size-1 dim == identity
        scale = g_ref[...] * nx + 1.0                          # (R, 1) f32
        _store_affine(o_ref, x_ref, scale, b_ref[...], low_prec)

    return pl.pallas_call(
        kernel,
        out_shape=jax.ShapeDtypeStruct((NC, S), out_dtype),
        grid_spec=pltpu.PrefetchScalarGridSpec(
            num_scalar_prefetch=0,
            grid=(pl.cdiv(NC, R),),
            in_specs=[
                pl.BlockSpec((R, S), lambda i: (i, 0)),
                pl.BlockSpec((R, 1), lambda i: (i, 0)),
                pl.BlockSpec((R, 1), lambda i: (i, 0)),
            ],
            out_specs=pl.BlockSpec((R, S), lambda i: (i, 0)),
        ),
        compiler_params=pltpu.CompilerParams(
            dimension_semantics=("parallel",),
            vmem_limit_bytes=vmem_limit,
        ),
        cost_estimate=pl.CostEstimate(
            flops=int(4 * NC * S),
            transcendentals=int(NC),
            bytes_accessed=int(2 * NC * S * itemsize),
        ),
    )(x2d, g_rows, b_rows)


# ----------------------------- two-pass path -------------------------------


def _grn_two_pass(x2d, g_rows, b_rows, R, s_tile, vmem_limit):
    NC, S = x2d.shape
    out_dtype = x2d.dtype
    itemsize = jnp.dtype(out_dtype).itemsize
    low_prec = jnp.dtype(out_dtype) == jnp.dtype(jnp.bfloat16)
    n_s = pl.cdiv(S, s_tile)
    n_rows = pl.cdiv(NC, R)
    ragged = (S % s_tile) != 0

    if n_rows >= 2 or n_s < 2:
        # ---- pass 1 (folded epilogue): accumulate per-row sum of squares
        #      over S tiles (reduction axis last, accumulator resident in the
        #      output block), then fold the GRN epilogue on the last tile so
        #      the output is directly scale = gamma*Nx + 1. ----
        def scale_kernel(x_ref, g_ref, sc_ref):
            j = pl.program_id(1)

            @pl.when(j == 0)
            def _():
                sc_ref[...] = jnp.zeros_like(sc_ref)

            x = x_ref[...].astype(jnp.float32)
            if ragged:
                @pl.when(j < n_s - 1)
                def _():
                    sc_ref[...] += jnp.sum(x * x, axis=-1, keepdims=True)

                @pl.when(j == n_s - 1)
                def _():
                    col = (n_s - 1) * s_tile + lax.broadcasted_iota(
                        jnp.int32, x.shape, 1)
                    xm = jnp.where(col < S, x, 0.0)
                    sc_ref[...] += jnp.sum(xm * xm, axis=-1, keepdims=True)
            else:
                sc_ref[...] += jnp.sum(x * x, axis=-1, keepdims=True)

            @pl.when(j == n_s - 1)
            def _():
                gx = jnp.sqrt(sc_ref[...])
                sc_ref[...] = g_ref[...] * (gx / (gx + 1e-6)) + 1.0

        scale = pl.pallas_call(
            scale_kernel,
            out_shape=jax.ShapeDtypeStruct((NC, 1), jnp.float32),
            grid_spec=pltpu.PrefetchScalarGridSpec(
                num_scalar_prefetch=0,
                grid=(n_rows, n_s),
                in_specs=[
                    pl.BlockSpec((R, s_tile), lambda i, j: (i, j)),
                    pl.BlockSpec((R, 1), lambda i, j: (i, 0)),
                ],
                out_specs=pl.BlockSpec((R, 1), lambda i, j: (i, 0)),
            ),
            compiler_params=pltpu.CompilerParams(
                dimension_semantics=("parallel", "arbitrary"),
                vmem_limit_bytes=vmem_limit,
            ),
            cost_estimate=pl.CostEstimate(
                flops=int(2 * NC * S),
                transcendentals=int(NC),
                bytes_accessed=int(NC * S * itemsize + 8 * NC),
            ),
        )(x2d, g_rows)

        def apply_kernel(x_ref, sc_ref, b_ref, o_ref):
            _store_affine(o_ref, x_ref, sc_ref[...], b_ref[...], low_prec)

        side_inputs = (scale, b_rows)
        side_specs = [
            pl.BlockSpec((R, 1), lambda i, j: (i, 0)),
            pl.BlockSpec((R, 1), lambda i, j: (i, 0)),
        ]
    else:
        # ---- pass 1 (partitioned): NC too small to split into >=2 row
        #      blocks, so split S into a leading *parallel* axis (keeps the
        #      second v7x TensorCore busy); per-part partial sums are combined
        #      in pass 2. Here R == NC (full row-dim block). ----
        n_parts = 2
        spp = pl.cdiv(n_s, n_parts)          # S tiles per part

        def ssq_part_kernel(x_ref, ps_ref):
            p = pl.program_id(1)
            j = pl.program_id(2)

            @pl.when(j == 0)
            def _():
                ps_ref[...] = jnp.zeros_like(ps_ref)

            t = p * spp + j                  # global S-tile index (unclamped)
            x = x_ref[...].astype(jnp.float32)
            full_cond = (t < n_s - 1) if ragged else (t <= n_s - 1)

            @pl.when(full_cond)
            def _():
                ps_ref[...] += jnp.sum(x * x, axis=-1, keepdims=True)[None]

            if ragged:
                @pl.when(t == n_s - 1)
                def _():
                    col = t * s_tile + lax.broadcasted_iota(
                        jnp.int32, x.shape, 1)
                    xm = jnp.where(col < S, x, 0.0)
                    ps_ref[...] += jnp.sum(xm * xm, axis=-1,
                                           keepdims=True)[None]
            # Tiles with t > n_s - 1 (block index clamped in the index_map)
            # contribute nothing.

        partials = pl.pallas_call(
            ssq_part_kernel,
            out_shape=jax.ShapeDtypeStruct((n_parts, NC, 1), jnp.float32),
            grid_spec=pltpu.PrefetchScalarGridSpec(
                num_scalar_prefetch=0,
                grid=(n_rows, n_parts, spp),
                in_specs=[
                    pl.BlockSpec(
                        (R, s_tile),
                        lambda i, p, j: (i, jnp.minimum(p * spp + j, n_s - 1))),
                ],
                out_specs=pl.BlockSpec((1, R, 1), lambda i, p, j: (p, i, 0)),
            ),
            compiler_params=pltpu.CompilerParams(
                dimension_semantics=("parallel", "parallel", "arbitrary"),
                vmem_limit_bytes=vmem_limit,
            ),
            cost_estimate=pl.CostEstimate(
                flops=int(2 * NC * S),
                transcendentals=0,
                bytes_accessed=int(NC * S * itemsize + 4 * NC * n_parts),
            ),
        )(x2d)

        def apply_kernel(x_ref, ps_ref, g_ref, b_ref, o_ref):
            ssq = jnp.sum(ps_ref[...], axis=0)          # combine partials, (R,1)
            gx = jnp.sqrt(ssq)
            scale = g_ref[...] * (gx / (gx + 1e-6)) + 1.0
            _store_affine(o_ref, x_ref, scale, b_ref[...], low_prec)

        side_inputs = (partials, g_rows, b_rows)
        side_specs = [
            pl.BlockSpec((n_parts, R, 1), lambda i, j: (0, i, 0)),
            pl.BlockSpec((R, 1), lambda i, j: (i, 0)),
            pl.BlockSpec((R, 1), lambda i, j: (i, 0)),
        ]

    # ---- pass 2: per-row affine, fully parallel, lane-dense 128*k tiles ----
    return pl.pallas_call(
        apply_kernel,
        out_shape=jax.ShapeDtypeStruct((NC, S), out_dtype),
        grid_spec=pltpu.PrefetchScalarGridSpec(
            num_scalar_prefetch=0,
            grid=(n_rows, n_s),
            in_specs=[pl.BlockSpec((R, s_tile), lambda i, j: (i, j))] + side_specs,
            out_specs=pl.BlockSpec((R, s_tile), lambda i, j: (i, j)),
        ),
        compiler_params=pltpu.CompilerParams(
            dimension_semantics=("parallel", "parallel"),
            vmem_limit_bytes=vmem_limit,
        ),
        cost_estimate=pl.CostEstimate(
            flops=int(2 * NC * S),
            transcendentals=0,
            bytes_accessed=int(2 * NC * S * itemsize),
        ),
    )(x2d, *side_inputs)


# ------------------------------- wrapper ------------------------------------


def grn_pallas(x, gamma, beta, *, s_tile=None):
    """GRN forward. x: (N, C, D, H, W); gamma/beta broadcastable to (C,).
    Same shape/dtype out. `s_tile` forces the two-pass (S-tiled) path."""
    N, C, D, H, W = x.shape
    S = D * H * W
    NC = N * C
    itemsize = jnp.dtype(x.dtype).itemsize
    sub = _sublane(itemsize)

    x2d = x.reshape(NC, S)
    # Per-row (row = n*C + c) parameter columns: only N*C scalars, negligible.
    g_rows = jnp.broadcast_to(
        gamma.reshape(-1)[None, :], (N, C)).reshape(NC, 1).astype(jnp.float32)
    b_rows = jnp.broadcast_to(
        beta.reshape(-1)[None, :], (N, C)).reshape(NC, 1).astype(jnp.float32)

    _, vmem_limit = _vmem_budget()
    # Pipelined working set ~= 2x input block + 2x output block (+ tiny
    # lane-padded (R,128) param tiles) -> budget one block at ~limit/4.
    sp_budget = max(1 << 20, vmem_limit // 4 - (1 << 20))   # single-pass blocks
    tp_budget = min(8 << 20, sp_budget)                     # tiled-path blocks

    row_bytes = min(NC, sub) * S * itemsize                 # one minimal row block

    if s_tile is None and row_bytes <= sp_budget:
        R = _pick_row_block(NC, S, itemsize, sub, sp_budget)
        out2d = _grn_single_pass(x2d, g_rows, b_rows, R, vmem_limit)
    else:
        R = min(NC, sub)
        st_cap = max(128, ((tp_budget // (R * itemsize)) // 128) * 128)
        if s_tile is None:
            st = st_cap
        else:
            st = max(128, min((int(s_tile) // 128) * 128, st_cap))
        if st >= S:
            # Degenerate tiling (one S tile covers the row): the single-pass
            # path does strictly less HBM traffic (2x instead of 3x).
            R = _pick_row_block(NC, S, itemsize, sub, sp_budget)
            out2d = _grn_single_pass(x2d, g_rows, b_rows, R, vmem_limit)
        else:
            out2d = _grn_two_pass(x2d, g_rows, b_rows, R, st, vmem_limit)

    return out2d.reshape(N, C, D, H, W)


def grn_reference(x, gamma, beta):
    """Pure-JAX reference matching the PyTorch forward exactly."""
    xf = x.astype(jnp.float32)
    gx = jnp.sqrt(jnp.sum(xf * xf, axis=(2, 3, 4), keepdims=True))
    nx = gx / (jnp.mean(gx, axis=-1, keepdims=True) + 1e-6)
    g = gamma.reshape(1, -1, 1, 1, 1).astype(jnp.float32)
    b = beta.reshape(1, -1, 1, 1, 1).astype(jnp.float32)
    return (g * (xf * nx) + b + xf).astype(x.dtype)


if __name__ == "__main__":
    key = jax.random.PRNGKey(0)
    k1, k2, k3 = jax.random.split(key, 3)

    def check(shape, dtype=jnp.float32, atol=1e-4, rtol=1e-4, **kw):
        N, C, D, H, W = shape
        x = jax.random.normal(k1, shape, dtype=jnp.float32).astype(dtype)
        gamma = jax.random.normal(k2, (1, C, 1, 1, 1), dtype=jnp.float32) * 0.1
        beta = jax.random.normal(k3, (1, C, 1, 1, 1), dtype=jnp.float32) * 0.1
        out = jax.block_until_ready(grn_pallas(x, gamma, beta, **kw))
        ref = grn_reference(x, gamma, beta)
        assert out.shape == x.shape and out.dtype == x.dtype
        assert jnp.allclose(out.astype(jnp.float32), ref.astype(jnp.float32),
                            atol=atol, rtol=rtol), f"mismatch {shape} {dtype} {kw}"

    # 1) Single-pass, NC a multiple of the sublane tile (no partial blocks).
    check((2, 4, 4, 8, 16))
    # 2) Single-pass with a ragged last row block (NC=15, no pad copy).
    check((5, 3, 2, 8, 16))
    # 3) Single-pass with S not a multiple of 128 (masked-lane reduce/stores).
    check((1, 3, 2, 10, 17))
    # 4) Two-pass, small NC -> S-partitioned pass 1 (megacore) + ragged tail.
    check((1, 3, 2, 10, 17), s_tile=128)
    # 5) Two-pass, folded-epilogue path (>=2 row blocks) + ragged last S tile.
    check((4, 4, 2, 10, 17), s_tile=128)
    # 6) bf16 single-pass (apply runs in bf16; reduction stays f32).
    check((2, 4, 4, 8, 16), dtype=jnp.bfloat16, atol=2e-1, rtol=5e-2)

    print("KERNEL_OK")
</pallas_src>

<mosaic_0001>
module attributes {stable_mosaic.version = 11 : i64} {
  func.func @kernel(%arg0: i32, %arg1: memref<8x512xf32, #tpu.memory_space<vmem>>, %arg2: memref<8x1xf32, #tpu.memory_space<vmem>>, %arg3: memref<8x1xf32, #tpu.memory_space<vmem>>, %arg4: memref<8x512xf32, #tpu.memory_space<vmem>>) attributes {dimension_semantics = [#tpu.dimension_semantics<parallel>], iteration_bounds = array<i64: 1>, scalar_prefetch = 0 : i64, scratch_operands = 0 : i64, tpu.core_type = #tpu.core_type<tc>, window_params = [{transform_indices = @transform_0, window_bounds = array<i64: 8, 512>}, {transform_indices = @transform_1, window_bounds = array<i64: 8, 1>}, {transform_indices = @transform_2, window_bounds = array<i64: 8, 1>}, {transform_indices = @transform_3, window_bounds = array<i64: 8, 512>}]} {
    %c0 = arith.constant 0 : index
    %c0_0 = arith.constant 0 : index
    %0 = vector.load %arg1[%c0, %c0_0] : memref<8x512xf32, #tpu.memory_space<vmem>>, vector<8x512xf32>
    %1 = arith.mulf %0, %0 : vector<8x512xf32>
    %cst = arith.constant dense<0.000000e+00> : vector<8xf32>
    %2 = vector.multi_reduction <add>, %1, %cst [1] : vector<8x512xf32> to vector<8xf32>
    %3 = vector.shape_cast %2 : vector<8xf32> to vector<8x1xf32>
    %4 = math.sqrt %3 : vector<8x1xf32>
    %cst_1 = arith.constant 9.99999997E-7 : f32
    %5 = vector.broadcast %cst_1 : f32 to vector<8x1xf32>
    %6 = arith.addf %4, %5 : vector<8x1xf32>
    %7 = arith.divf %4, %6 : vector<8x1xf32>
    %c0_2 = arith.constant 0 : index
    %c0_3 = arith.constant 0 : index
    %8 = vector.load %arg2[%c0_2, %c0_3] : memref<8x1xf32, #tpu.memory_space<vmem>>, vector<8x1xf32>
    %9 = arith.mulf %8, %7 : vector<8x1xf32>
    %cst_4 = arith.constant 1.000000e+00 : f32
    %10 = vector.broadcast %cst_4 : f32 to vector<8x1xf32>
    %11 = arith.addf %9, %10 : vector<8x1xf32>
    %c0_5 = arith.constant 0 : index
    %c0_6 = arith.constant 0 : index
    %12 = vector.load %arg3[%c0_5, %c0_6] : memref<8x1xf32, #tpu.memory_space<vmem>>, vector<8x1xf32>
    %c0_7 = arith.constant 0 : index
    %c0_8 = arith.constant 0 : index
    %13 = vector.load %arg1[%c0_7, %c0_8] : memref<8x512xf32, #tpu.memory_space<vmem>>, vector<8x512xf32>
    %14 = vector.broadcast %11 : vector<8x1xf32> to vector<8x512xf32>
    %15 = arith.mulf %13, %14 : vector<8x512xf32>
    %16 = vector.broadcast %12 : vector<8x1xf32> to vector<8x512xf32>
    %17 = arith.addf %15, %16 : vector<8x512xf32>
    %c0_9 = arith.constant 0 : index
    %c0_10 = arith.constant 0 : index
    %18 = vector.load %arg4[%c0_9, %c0_10] : memref<8x512xf32, #tpu.memory_space<vmem>>, vector<8x512xf32>
    tpu.vector_store %arg4[%c0_9, %c0_10], %17 {strides = array<i32>} : memref<8x512xf32, #tpu.memory_space<vmem>>, vector<8x512xf32>,
    return
  }
  func.func @transform_0(%arg0: i32) -> (i32, i32) {
    %c0_i32 = arith.constant 0 : i32
    %c0_i32_0 = arith.constant 0 : i32
    return %arg0, %c0_i32 : i32, i32
  }
  func.func @transform_1(%arg0: i32) -> (i32, i32) {
    %c0_i32 = arith.constant 0 : i32
    %c0_i32_0 = arith.constant 0 : i32
    return %arg0, %c0_i32 : i32, i32
  }
  func.func @transform_2(%arg0: i32) -> (i32, i32) {
    %c0_i32 = arith.constant 0 : i32
    %c0_i32_0 = arith.constant 0 : i32
    return %arg0, %c0_i32 : i32, i32
  }
  func.func @transform_3(%arg0: i32) -> (i32, i32) {
    %c0_i32 = arith.constant 0 : i32
    %c0_i32_0 = arith.constant 0 : i32
    return %arg0, %c0_i32 : i32, i32
  }
}

</mosaic_0001>

<llo_original>
// kernel: tpu_custom_call.1
$region0: #{tpu_custom_call.1}
  #allocation0 [shape = 'u32[]', space=smem, size = 0x4, offset = 0x4, fixed_abs, tag = 'smem constant byte address 0x4 - core index']
  #allocation1 [shape = 'u32[144,128]{1,0:T(1,128)}', space=vmem, size = 0x12000, scoped, tag = 'internal scratch']
  %s0 = inlined_call_operand.hbm [shape: f32[8,512], index: 0, kind: input, shape index: {}]
  %s1 = inlined_call_operand.vmem [shape: f32[8,1], index: 1, kind: input, shape index: {}]
  %s2 = inlined_call_operand.vmem [shape: f32[8,1], index: 2, kind: input, shape index: {}]
  %s3 = inlined_call_operand.hbm [shape: f32[8,512], index: 3, kind: output, shape index: {}]
  %s4 = sld [smem:[#allocation0]]
  $region26: #{tpu_custom_call.1} parent=0
    _
  %s6 = ssub.s32 1, %s4
  %s7 = scalar_select 0, %s6, %s4
  $region1: #{tpu_custom_call.1} parent=0
    #allocation2 [shape = 'u8[16384]{0}', space=vmem, size = 0x4000, scoped, tag = 'input window, operand 0, single buffered']
    #allocation3 [shape = 's32[1]{0}', space=sflag, size = 0x4, scoped, tag = 'scoped memory for tpu_custom_call.1']
    #allocation4 [shape = 's32[1]{0}', space=sflag, size = 0x4, scoped, tag = 'scoped memory for tpu_custom_call.1']
    #allocation5 [shape = 'u8[16384]{0}', space=vmem, size = 0x4000, scoped, tag = 'output window, operand 0, single buffered']
    %8 = vsyncpa [#allocation3], 0
    %9 = vsyncpa [#allocation4], 0
    // Predicated region
    $region2: #{tpu_custom_call.1} parent=1 // pred_check
      _
    $region3: #{tpu_custom_call.1} parent=1 // pred_check_branch
      %11 = sbr.rel (0) target = $region5
    $region4: #{tpu_custom_call.1} parent=1 // pred_region
      %s13 = ssub.s32 512, 512
      %14 = vsyncadd [#allocation3], %s13
      %s16 = sshll.u32 [#allocation2], 4
      %s17 = int_to_ptr.vmem [resolvable:$true] %s16
      %19 = dma.hbm_to_vmem [thread:$0]  %s0, 512, %s17, [#allocation3]
    $region5: #{tpu_custom_call.1} parent=1 // pred_fallthru
      _
    // Predicated region
    $region6: #{tpu_custom_call.1} parent=1 // pred_check
      _
    $region7: #{tpu_custom_call.1} parent=1 // pred_check_branch
      %21 = sbr.rel (0) target = $region9
    $region8: #{tpu_custom_call.1} parent=1 // pred_region
      _
    $region9: #{tpu_custom_call.1} parent=1 // pred_fallthru
      _
    // Predicated region
    $region10: #{tpu_custom_call.1} parent=1 // pred_check
      _
    $region11: #{tpu_custom_call.1} parent=1 // pred_check_branch
      %23 = sbr.rel (0) target = $region13
    $region12: #{tpu_custom_call.1} parent=1 // pred_region
      _
    $region13: #{tpu_custom_call.1} parent=1 // pred_fallthru
      _
    // Predicated region
    $region14: #{tpu_custom_call.1} parent=1 // pred_check
      _
    $region15: #{tpu_custom_call.1} parent=1 // pred_check_branch
      %25 = sbr.rel (0) target = $region17
    $region16: #{tpu_custom_call.1} parent=1 // pred_region
      %26 = dma.done [#allocation3], 512
    $region17: #{tpu_custom_call.1} parent=1 // pred_fallthru
      _
    %v27 = vld [vmem:[#allocation2] sm:$0xff]
    %v28 = vld [vmem:[#allocation2 + $0x8] sm:$0xff]
    %v29 = vld [vmem:[#allocation2 + $0x10] sm:$0xff]
    %v30 = vld [vmem:[#allocation2 + $0x18] sm:$0xff]
    %v31 = vmul.f32 %v27, %v27
    %v32 = vmul.f32 %v28, %v28
    %v33 = vmul.f32 %v29, %v29
    %v34 = vmul.f32 %v30, %v30
    %v35 = vadd.f32 %v31, %v32
    %v36 = vadd.f32 %v35, %v33
    %v37 = vadd.f32 %v36, %v34
    %38 = vadd.xlane.f32.xlu0 %v37
    %v39 = vpop.xlane.xlu0 %38
    %v40 = vrsqrt.pop %v39
    %v41 = vmul.f32 %v39, %v40
    %vm42 = vcmp.eq.f32.partialorder %v39, inf
    %v43 = vsel %vm42, %v39, %v41
    %vm44 = vcmp.eq.f32.partialorder %v39, 0.0
    %v45 = vand.u32 %v39, 2147483648
    %v46 = vsel %vm44, %v45, %v43
    %v47 = vadd.f32 %v46, 1e-06
    %v48 = vrcp.pop %v47
    %v49 = vmul.f32 %v46, %v48
    %v50 = vld [vmem:[%s1] sm:$0xff]
    %v51 = vmul.f32 %v50, %v49
    %v52 = vadd.f32 %v51, 1.0
    %v53 = vld [vmem:[%s2] sm:$0xff]
    %55 = vset.pattern.permute.xlu0 0
    %56 = vperm.xlu0 %55, %v52
    %v57 = vpop.permute.xlu0 %56
    %v59 = vmul.f32 %v27, %v57
    %v60 = vmul.f32 %v28, %v57
    %v61 = vmul.f32 %v29, %v57
    %v62 = vmul.f32 %v30, %v57
    %64 = vset.pattern.permute.xlu0 0
    %65 = vperm.xlu0 %64, %v53
    %v66 = vpop.permute.xlu0 %65
    %v68 = vadd.f32 %v59, %v66
    %v69 = vadd.f32 %v60, %v66
    %v70 = vadd.f32 %v61, %v66
    %v71 = vadd.f32 %v62, %v66
    %72 = vst [vmem:[#allocation5] sm:$0xff] %v68
    %73 = vst [vmem:[#allocation5 + $0x8] sm:$0xff] %v69
    %74 = vst [vmem:[#allocation5 + $0x10] sm:$0xff] %v70
    %75 = vst [vmem:[#allocation5 + $0x18] sm:$0xff] %v71
    // Predicated region
    $region18: #{tpu_custom_call.1} parent=1 // pred_check
      _
    $region19: #{tpu_custom_call.1} parent=1 // pred_check_branch
      %77 = sbr.rel (0) target = $region21
    $region20: #{tpu_custom_call.1} parent=1 // pred_region
      %s79 = ssub.s32 512, 512
      %80 = vsyncadd [#allocation4], %s79
      %s82 = sshll.u32 [#allocation5], 4
      %s83 = int_to_ptr.vmem [resolvable:$true] %s82
      %85 = dma.vmem_to_hbm [thread:$0]  %s83, 512, %s3, [#allocation4]
    $region21: #{tpu_custom_call.1} parent=1 // pred_fallthru
      _
    // Predicated region
    $region22: #{tpu_custom_call.1} parent=1 // pred_check
      _
    $region23: #{tpu_custom_call.1} parent=1 // pred_check_branch
      %87 = sbr.rel (0) target = $region25
    $region24: #{tpu_custom_call.1} parent=1 // pred_region
      %88 = dma.done [#allocation4], 512
    $region25: #{tpu_custom_call.1} parent=1 // pred_fallthru
      _
    %89 = vsyncpa [#allocation3], 1
    %90 = vsyncpa [#allocation4], 1

</llo_original>
